<compile_context>
chip_gen: v7x
topology: tpu7x:2x2x1
jax: 0.10.0
libtpu: 0.0.40
codegen_flags: <defaults>
</compile_context>

<pallas_src>
import functools

import jax
import jax.numpy as jnp
from jax.experimental import pallas as pl
from jax.experimental.pallas import tpu as pltpu


# ----------------------------- kernels ------------------------------------ #

def _resblock_kernel_shortcut(x_ref, w0_ref, b0_ref, w1_ref, b1_ref, ws_ref, o_ref):
    """One batch tile of the resnet block, with a learned linear shortcut."""
    x = x_ref[...]                                       # MXU operand dtype
    h0 = jnp.maximum(x, 0)                               # relu (exact in any dtype)
    net = jnp.dot(h0, w0_ref[...], preferred_element_type=jnp.float32) + b0_ref[...]
    h1 = jnp.maximum(net, 0.0).astype(w1_ref.dtype)      # f32 relu -> MXU dtype
    dx = jnp.dot(h1, w1_ref[...], preferred_element_type=jnp.float32) + b1_ref[...]
    x_s = jnp.dot(x, ws_ref[...], preferred_element_type=jnp.float32)
    o_ref[...] = (x_s + dx).astype(o_ref.dtype)


def _resblock_kernel_identity(x_ref, w0_ref, b0_ref, w1_ref, b1_ref, o_ref):
    """One batch tile of the resnet block, identity shortcut (in_size == out_size)."""
    x = x_ref[...]
    h0 = jnp.maximum(x, 0)
    net = jnp.dot(h0, w0_ref[...], preferred_element_type=jnp.float32) + b0_ref[...]
    h1 = jnp.maximum(net, 0.0).astype(w1_ref.dtype)
    dx = jnp.dot(h1, w1_ref[...], preferred_element_type=jnp.float32) + b1_ref[...]
    o_ref[...] = (x.astype(jnp.float32) + dx).astype(o_ref.dtype)


# ----------------------------- helpers ------------------------------------ #

def _round_up(n, m):
    return ((n + m - 1) // m) * m


@functools.lru_cache(maxsize=1)
def _vmem_budgets():
    """(data_budget_bytes, vmem_limit_cap_bytes), sized from the chip's VMEM."""
    try:
        cap = int(pltpu.get_tpu_info().vmem_capacity_bytes)
    except Exception:
        cap = 64 * 2**20                          # conservative default (v7x)
    if cap >= 96 * 2**20:                         # v5e / v6e: 128 MiB physical
        return 80 * 2**20, 96 * 2**20
    return 24 * 2**20, 48 * 2**20                 # v7x: 64 MiB physical


@functools.lru_cache(maxsize=1)
def _buffered1_supported():
    """One-time check that this JAX / Mosaic accepts pl.Buffered(1) blocks.

    Cached so per-call dispatch stays async (no try/except, no host sync).
    """
    if not hasattr(pl, "Buffered"):
        return False
    try:
        def k(a_ref, b_ref, o_ref):
            o_ref[...] = a_ref[...] + b_ref[...]
        f = pl.pallas_call(
            k,
            out_shape=jax.ShapeDtypeStruct((8, 128), jnp.float32),
            grid_spec=pltpu.PrefetchScalarGridSpec(
                num_scalar_prefetch=0,
                grid=(1,),
                in_specs=[pl.BlockSpec((8, 128), lambda i: (0, 0)),
                          pl.BlockSpec((8, 128), lambda i: (0, 0),
                                       pipeline_mode=pl.Buffered(1))],
                out_specs=pl.BlockSpec((8, 128), lambda i: (0, 0)),
            ),
        )
        z = jnp.zeros((8, 128), jnp.float32)
        jax.jit(f).lower(z, z).compile()
        return True
    except Exception:
        return False


def _choose_block_b(B, d_in_p, d_hid_p, d_out_p, in_bytes, data_budget):
    """Batch tile: single step if the batch fits the VMEM budget; otherwise the
    smallest even split (pad <= a few rows), snapped up to an MXU-friendly row
    multiple only when that costs little extra padding."""
    weight_bytes = ((d_in_p * d_hid_p + d_hid_p * d_out_p + d_in_p * d_out_p) * in_bytes
                    + 4 * (d_hid_p + d_out_p))
    avail = max(data_budget - weight_bytes, 1 << 20)
    # double-buffered x/out tiles + rough per-row f32 temporaries in the body
    per_row = 2 * (d_in_p + d_out_p) * in_bytes + 4 * (d_in_p + d_hid_p + 2 * d_out_p)
    cap = 2048 if (d_in_p + d_out_p) <= 512 else 1024
    target = int(max(8, min(cap, (avail // per_row) // 8 * 8)))
    if B <= target:
        return _round_up(B, 8)                    # single grid step, minimal pad
    n_steps = -(-B // target)
    bb = _round_up(-(-B // n_steps), 8)           # total pad <= ~8 rows per step
    for align in (256, 128):                      # MXU-friendly row multiples
        bb_al = _round_up(bb, align)
        if bb_al <= target and n_steps * bb_al - B <= max(align, B // 16):
            return bb_al
    return bb


# ------------------------ params preparation ------------------------------- #

def prepare_resnet_block_fc_params(params, compute_dtype=None):
    """One-time padding / casting of the weights (hoisted out of the per-call
    wrapper so weight pads are not re-materialized on every forward).

    params: w0 (in, hid), b0 (hid,), w1 (hid, out), b1 (out,),
            ws (in, out) or None (identity shortcut).
    compute_dtype: MXU operand dtype; pass jnp.bfloat16 for ~3-4x matmul
      throughput on v5e/v6e/v7x (accumulation stays f32).  Defaults to w0.dtype.
    """
    w0, b0, w1, b1 = params["w0"], params["b0"], params["w1"], params["b1"]
    ws = params.get("ws", None)
    d_in, d_hid = w0.shape
    d_out = w1.shape[1]
    if ws is None:
        assert d_in == d_out, "identity shortcut requires input_size == output_size"
    cdt = jnp.dtype(compute_dtype) if compute_dtype is not None else jnp.dtype(w0.dtype)

    # lane-dense padding of the feature dims (multiples of 128)
    d_in_p, d_hid_p, d_out_p = (_round_up(d_in, 128), _round_up(d_hid, 128),
                                _round_up(d_out, 128))
    w0_p = jnp.pad(w0.astype(cdt), ((0, d_in_p - d_in), (0, d_hid_p - d_hid)))
    w1_p = jnp.pad(w1.astype(cdt), ((0, d_hid_p - d_hid), (0, d_out_p - d_out)))
    b0_p = jnp.pad(b0.astype(jnp.float32), (0, d_hid_p - d_hid)).reshape(1, d_hid_p)
    b1_p = jnp.pad(b1.astype(jnp.float32), (0, d_out_p - d_out)).reshape(1, d_out_p)
    ws_p = None
    if ws is not None:
        ws_p = jnp.pad(ws.astype(cdt), ((0, d_in_p - d_in), (0, d_out_p - d_out)))
    return dict(_prepared=True, dtype=cdt,
                dims=(d_in, d_hid, d_out), pdims=(d_in_p, d_hid_p, d_out_p),
                w0=w0_p, b0=b0_p, w1=w1_p, b1=b1_p, ws=ws_p)


# ----------------------------- wrapper ------------------------------------ #

def resnet_block_fc(x, params, *, block_b=None, interpret=False):
    """Applies ResnetBlockFC to x of shape (..., input_size).

    params may be raw (w0/b0/w1/b1/ws) or the output of
    prepare_resnet_block_fc_params (preferred: pads/casts weights once).
    Output dtype follows x.dtype; accumulation is always f32.
    """
    if not params.get("_prepared", False):
        params = prepare_resnet_block_fc_params(params)
    d_in, d_hid, d_out = params["dims"]
    d_in_p, d_hid_p, d_out_p = params["pdims"]
    mxu_dt = params["dtype"]
    out_dt = x.dtype

    lead_shape = x.shape[:-1]
    assert x.shape[-1] == d_in, "last dim of x must equal input_size"
    x2 = x.reshape(-1, d_in) if x.ndim != 2 else x
    B = x2.shape[0]

    in_bytes = jnp.dtype(mxu_dt).itemsize
    out_bytes = jnp.dtype(out_dt).itemsize
    data_budget, limit_cap = _vmem_budgets()

    if block_b is None:
        bb = _choose_block_b(B, d_in_p, d_hid_p, d_out_p, in_bytes, data_budget)
    else:
        bb = max(8, _round_up(int(block_b), 8))
    B_pad = _round_up(B, bb)
    grid = (B_pad // bb,)

    # Per-call x prep: cast + pad only when needed (zero pad is exact here).
    x_p = x2.astype(mxu_dt)
    if B_pad != B or d_in_p != d_in:
        x_p = jnp.pad(x_p, ((0, B_pad - B), (0, d_in_p - d_in)))

    w0_p, b0_p, w1_p, b1_p, ws_p = (params["w0"], params["b0"], params["w1"],
                                    params["b1"], params["ws"])

    # ---- cost estimate ----------------------------------------------------- #
    flops = 2 * B_pad * (d_in_p * d_hid_p + d_hid_p * d_out_p)
    if ws_p is not None:
        flops += 2 * B_pad * d_in_p * d_out_p
    bytes_accessed = ((x_p.size + w0_p.size + w1_p.size
                       + (ws_p.size if ws_p is not None else 0)) * in_bytes
                      + (b0_p.size + b1_p.size) * 4
                      + B_pad * d_out_p * out_bytes)
    cost = pl.CostEstimate(flops=int(flops), transcendentals=0,
                           bytes_accessed=int(bytes_accessed))

    # ---- VMEM limit (footprint-aware, generation-aware) -------------------- #
    use_buf1 = (not interpret) and _buffered1_supported()
    wmult = 1 if use_buf1 else 2                 # resident copies of each weight block
    weight_bytes = ((w0_p.size + w1_p.size + (ws_p.size if ws_p is not None else 0)) * in_bytes
                    + (b0_p.size + b1_p.size) * 4)
    io_bytes = 2 * bb * d_in_p * in_bytes + 2 * bb * d_out_p * out_bytes
    live_f32 = 4 * bb * (d_in_p + d_hid_p + 2 * d_out_p)
    footprint = wmult * weight_bytes + io_bytes + live_f32
    vmem_limit = int(min(limit_cap, max(32 * 2**20, 2 * footprint)))

    cparams = pltpu.CompilerParams(
        dimension_semantics=("parallel",),
        vmem_limit_bytes=vmem_limit,
    )

    # Grid-invariant weight blocks single-buffered when supported (stay resident).
    wkw = dict(pipeline_mode=pl.Buffered(1)) if use_buf1 else {}
    in_specs = [pl.BlockSpec((bb, d_in_p), lambda i: (i, 0)),
                pl.BlockSpec((d_in_p, d_hid_p), lambda i: (0, 0), **wkw),
                pl.BlockSpec((1, d_hid_p), lambda i: (0, 0), **wkw),
                pl.BlockSpec((d_hid_p, d_out_p), lambda i: (0, 0), **wkw),
                pl.BlockSpec((1, d_out_p), lambda i: (0, 0), **wkw)]
    args = [x_p, w0_p, b0_p, w1_p, b1_p]
    if ws_p is not None:
        in_specs.append(pl.BlockSpec((d_in_p, d_out_p), lambda i: (0, 0), **wkw))
        args.append(ws_p)
        kernel = _resblock_kernel_shortcut
    else:
        kernel = _resblock_kernel_identity

    out_p = pl.pallas_call(
        kernel,
        out_shape=jax.ShapeDtypeStruct((B_pad, d_out_p), out_dt),
        grid_spec=pltpu.PrefetchScalarGridSpec(
            num_scalar_prefetch=0,
            grid=grid,
            in_specs=in_specs,
            out_specs=pl.BlockSpec((bb, d_out_p), lambda i: (i, 0)),  # lane-dense
        ),
        compiler_params=cparams,
        cost_estimate=cost,
        interpret=interpret,
    )(*args)

    if B_pad != B or d_out_p != d_out:
        out_p = out_p[:B, :d_out]
    if lead_shape != (B,):
        out_p = out_p.reshape(lead_shape + (d_out,))
    return out_p


# ------------------------ deterministic init ------------------------------- #

def init_resnet_block_fc(key, input_size, output_size=None, hidden_size=None):
    """Mirrors ResnetBlockFC.__init__ shapes. Weights are stored transposed
    ((in, out)) relative to PyTorch's nn.Linear ((out, in))."""
    if output_size is None:
        output_size = input_size
    if hidden_size is None:
        hidden_size = min(input_size, output_size)

    k0, ks = jax.random.split(key, 2)
    # fc_0: kaiming_normal_(fan_in) -> std = sqrt(2 / fan_in), bias = 0
    std0 = (2.0 / input_size) ** 0.5
    w0 = std0 * jax.random.normal(k0, (input_size, hidden_size), jnp.float32)
    b0 = jnp.zeros((hidden_size,), jnp.float32)
    # fc_1: weights zero, bias zero (as in the module's __init__)
    w1 = jnp.zeros((hidden_size, output_size), jnp.float32)
    b1 = jnp.zeros((output_size,), jnp.float32)
    # shortcut only if input_size != output_size: kaiming_normal_, no bias
    if input_size == output_size:
        ws = None
    else:
        stds = (2.0 / input_size) ** 0.5
        ws = stds * jax.random.normal(ks, (input_size, output_size), jnp.float32)
    return dict(w0=w0, b0=b0, w1=w1, b1=b1, ws=ws)


def resnet_block_fc_ref(x, params):
    """Pure-JAX reference for verification."""
    relu = lambda v: jnp.maximum(v, 0.0)
    net = relu(x) @ params["w0"] + params["b0"]
    dx = relu(net) @ params["w1"] + params["b1"]
    x_s = x if params["ws"] is None else x @ params["ws"]
    return x_s + dx


# ------------------------------- main -------------------------------------- #

if __name__ == "__main__":
    key = jax.random.PRNGKey(0)
    kx1, kx2, kw1a, kw1b, kp1, kp2 = jax.random.split(key, 6)

    # Case 1: input_size != output_size -> learned linear shortcut (f32),
    # with non-zero fc_1 weights so both matmuls are exercised.
    B, D_IN, D_OUT = 16, 32, 48               # hidden = min(32, 48) = 32
    x1 = jax.random.normal(kx1, (B, D_IN), jnp.float32)
    p1 = init_resnet_block_fc(kp1, D_IN, D_OUT)
    p1["w1"] = 0.05 * jax.random.normal(kw1a, p1["w1"].shape, jnp.float32)
    prep1 = prepare_resnet_block_fc_params(p1)            # hoisted weight prep
    y1 = resnet_block_fc(x1, prep1)
    jax.block_until_ready(y1)
    r1 = resnet_block_fc_ref(x1, p1)
    assert y1.shape == (B, D_OUT)
    assert jnp.allclose(y1, r1, atol=1e-4, rtol=1e-4), "shortcut case mismatch"

    # Case 2: input_size == output_size -> identity shortcut, ragged batch (f32).
    B2, D = 13, 32
    x2 = jax.random.normal(kx2, (B2, D), jnp.float32)
    p2 = init_resnet_block_fc(kp2, D)
    p2["w1"] = 0.05 * jax.random.normal(kw1b, p2["w1"].shape, jnp.float32)
    y2 = resnet_block_fc(x2, p2)                           # raw params path
    jax.block_until_ready(y2)
    r2 = resnet_block_fc_ref(x2, p2)
    assert y2.shape == (B2, D)
    assert jnp.allclose(y2, r2, atol=1e-4, rtol=1e-4), "identity case mismatch"

    # Case 3: opt-in bf16 MXU operands on f32 inputs (f32 accumulation, f32 output).
    prep1_bf = prepare_resnet_block_fc_params(p1, compute_dtype=jnp.bfloat16)
    y3 = resnet_block_fc(x1, prep1_bf)
    jax.block_until_ready(y3)
    p1_bf_ref = {k: (None if v is None else v.astype(jnp.bfloat16).astype(jnp.float32))
                 for k, v in p1.items()}
    r3 = resnet_block_fc_ref(x1.astype(jnp.bfloat16).astype(jnp.float32), p1_bf_ref)
    assert y3.shape == (B, D_OUT)
    assert y3.dtype == jnp.float32
    assert jnp.allclose(y3, r3, atol=5e-2, rtol=5e-2), "bf16 case mismatch"

    print("KERNEL_OK")
</pallas_src>

<mosaic_0001>
module attributes {stable_mosaic.version = 11 : i64} {
  func.func @_resblock_kernel_shortcut(%arg0: i32, %arg1: memref<16x128xf32, #tpu.memory_space<vmem>>, %arg2: memref<128x128xf32, #tpu.memory_space<vmem>>, %arg3: memref<1x128xf32, #tpu.memory_space<vmem>>, %arg4: memref<128x128xf32, #tpu.memory_space<vmem>>, %arg5: memref<1x128xf32, #tpu.memory_space<vmem>>, %arg6: memref<128x128xf32, #tpu.memory_space<vmem>>, %arg7: memref<16x128xf32, #tpu.memory_space<vmem>>) attributes {dimension_semantics = [#tpu.dimension_semantics<parallel>], iteration_bounds = array<i64: 1>, scalar_prefetch = 0 : i64, scratch_operands = 0 : i64, tpu.core_type = #tpu.core_type<tc>, window_params = [{transform_indices = @transform_0, window_bounds = array<i64: 16, 128>}, {pipeline_mode = #tpu.pipeline_mode<synchronous>, transform_indices = @transform_1, window_bounds = array<i64: 128, 128>}, {pipeline_mode = #tpu.pipeline_mode<synchronous>, transform_indices = @transform_2, window_bounds = array<i64: 1, 128>}, {pipeline_mode = #tpu.pipeline_mode<synchronous>, transform_indices = @transform_3, window_bounds = array<i64: 128, 128>}, {pipeline_mode = #tpu.pipeline_mode<synchronous>, transform_indices = @transform_4, window_bounds = array<i64: 1, 128>}, {pipeline_mode = #tpu.pipeline_mode<synchronous>, transform_indices = @transform_5, window_bounds = array<i64: 128, 128>}, {transform_indices = @transform_6, window_bounds = array<i64: 16, 128>}]} {
    %c0 = arith.constant 0 : index
    %c0_0 = arith.constant 0 : index
    %0 = vector.load %arg1[%c0, %c0_0] : memref<16x128xf32, #tpu.memory_space<vmem>>, vector<16x128xf32>
    %cst = arith.constant 0.000000e+00 : f32
    %1 = vector.broadcast %cst : f32 to vector<16x128xf32>
    %2 = arith.maximumf %0, %1 : vector<16x128xf32>
    %c0_1 = arith.constant 0 : index
    %c0_2 = arith.constant 0 : index
    %3 = vector.load %arg2[%c0_1, %c0_2] : memref<128x128xf32, #tpu.memory_space<vmem>>, vector<128x128xf32>
    %cst_3 = arith.constant dense<0.000000e+00> : vector<16x128xf32>
    %4 = tpu.matmul %2, %3, %cst_3 {dimension_numbers = #tpu.dot_dimension_numbers<[1], [0], [0], [1], [0, 0, 1, 1], [], []>} : vector<16x128xf32>, vector<128x128xf32>, vector<16x128xf32> -> vector<16x128xf32>
    %c0_4 = arith.constant 0 : index
    %c0_5 = arith.constant 0 : index
    %5 = vector.load %arg3[%c0_4, %c0_5] : memref<1x128xf32, #tpu.memory_space<vmem>>, vector<1x128xf32>
    %6 = vector.broadcast %5 : vector<1x128xf32> to vector<16x128xf32>
    %7 = arith.addf %4, %6 : vector<16x128xf32>
    %cst_6 = arith.constant 0.000000e+00 : f32
    %8 = vector.broadcast %cst_6 : f32 to vector<16x128xf32>
    %9 = arith.maximumf %7, %8 : vector<16x128xf32>
    %c0_7 = arith.constant 0 : index
    %c0_8 = arith.constant 0 : index
    %10 = vector.load %arg4[%c0_7, %c0_8] : memref<128x128xf32, #tpu.memory_space<vmem>>, vector<128x128xf32>
    %cst_9 = arith.constant dense<0.000000e+00> : vector<16x128xf32>
    %11 = tpu.matmul %9, %10, %cst_9 {dimension_numbers = #tpu.dot_dimension_numbers<[1], [0], [0], [1], [0, 0, 1, 1], [], []>} : vector<16x128xf32>, vector<128x128xf32>, vector<16x128xf32> -> vector<16x128xf32>
    %c0_10 = arith.constant 0 : index
    %c0_11 = arith.constant 0 : index
    %12 = vector.load %arg5[%c0_10, %c0_11] : memref<1x128xf32, #tpu.memory_space<vmem>>, vector<1x128xf32>
    %13 = vector.broadcast %12 : vector<1x128xf32> to vector<16x128xf32>
    %14 = arith.addf %11, %13 : vector<16x128xf32>
    %c0_12 = arith.constant 0 : index
    %c0_13 = arith.constant 0 : index
    %15 = vector.load %arg6[%c0_12, %c0_13] : memref<128x128xf32, #tpu.memory_space<vmem>>, vector<128x128xf32>
    %cst_14 = arith.constant dense<0.000000e+00> : vector<16x128xf32>
    %16 = tpu.matmul %0, %15, %cst_14 {dimension_numbers = #tpu.dot_dimension_numbers<[1], [0], [0], [1], [0, 0, 1, 1], [], []>} : vector<16x128xf32>, vector<128x128xf32>, vector<16x128xf32> -> vector<16x128xf32>
    %17 = arith.addf %16, %14 : vector<16x128xf32>
    %c0_15 = arith.constant 0 : index
    %c0_16 = arith.constant 0 : index
    %18 = vector.load %arg7[%c0_15, %c0_16] : memref<16x128xf32, #tpu.memory_space<vmem>>, vector<16x128xf32>
    tpu.vector_store %arg7[%c0_15, %c0_16], %17 {strides = array<i32>} : memref<16x128xf32, #tpu.memory_space<vmem>>, vector<16x128xf32>,
    return
  }
  func.func @transform_0(%arg0: i32) -> (i32, i32) {
    %c0_i32 = arith.constant 0 : i32
    %c0_i32_0 = arith.constant 0 : i32
    return %arg0, %c0_i32 : i32, i32
  }
  func.func @transform_1(%arg0: i32) -> (i32, i32) {
    %c0_i32 = arith.constant 0 : i32
    %c0_i32_0 = arith.constant 0 : i32
    %c0_i32_1 = arith.constant 0 : i32
    return %c0_i32, %c0_i32_0 : i32, i32
  }
  func.func @transform_2(%arg0: i32) -> (i32, i32) {
    %c0_i32 = arith.constant 0 : i32
    %c0_i32_0 = arith.constant 0 : i32
    %c0_i32_1 = arith.constant 0 : i32
    return %c0_i32, %c0_i32_0 : i32, i32
  }
  func.func @transform_3(%arg0: i32) -> (i32, i32) {
    %c0_i32 = arith.constant 0 : i32
    %c0_i32_0 = arith.constant 0 : i32
    %c0_i32_1 = arith.constant 0 : i32
    return %c0_i32, %c0_i32_0 : i32, i32
  }
  func.func @transform_4(%arg0: i32) -> (i32, i32) {
    %c0_i32 = arith.constant 0 : i32
    %c0_i32_0 = arith.constant 0 : i32
    %c0_i32_1 = arith.constant 0 : i32
    return %c0_i32, %c0_i32_0 : i32, i32
  }
  func.func @transform_5(%arg0: i32) -> (i32, i32) {
    %c0_i32 = arith.constant 0 : i32
    %c0_i32_0 = arith.constant 0 : i32
    %c0_i32_1 = arith.constant 0 : i32
    return %c0_i32, %c0_i32_0 : i32, i32
  }
  func.func @transform_6(%arg0: i32) -> (i32, i32) {
    %c0_i32 = arith.constant 0 : i32
    %c0_i32_0 = arith.constant 0 : i32
    return %arg0, %c0_i32 : i32, i32
  }
}

</mosaic_0001>

<llo_original>
// kernel: tpu_custom_call.1
$region0: #{tpu_custom_call.1}
  #allocation0 [shape = 'u32[]', space=smem, size = 0x4, offset = 0x4, fixed_abs, tag = 'smem constant byte address 0x4 - core index']
  #allocation1 [shape = 'u32[144,128]{1,0:T(1,128)}', space=vmem, size = 0x12000, scoped, tag = 'internal scratch']
  %s0 = inlined_call_operand.hbm [shape: f32[16,128], index: 0, kind: input, shape index: {}]
  %s1 = inlined_call_operand.hbm [shape: f32[128,128], index: 1, kind: input, shape index: {}]
  %s2 = inlined_call_operand.vmem [shape: f32[1,128], index: 2, kind: input, shape index: {}]
  %s3 = inlined_call_operand.hbm [shape: f32[128,128], index: 3, kind: input, shape index: {}]
  %s4 = inlined_call_operand.vmem [shape: f32[1,128], index: 4, kind: input, shape index: {}]
  %s5 = inlined_call_operand.hbm [shape: f32[128,128], index: 5, kind: input, shape index: {}]
  %s6 = inlined_call_operand.hbm [shape: f32[16,128], index: 6, kind: output, shape index: {}]
  %s7 = sld [smem:[#allocation0]]
  $region50: #{tpu_custom_call.1} parent=0
    _
  %s9 = ssub.s32 1, %s7
  %s10 = scalar_select 0, %s9, %s7
  $region1: #{tpu_custom_call.1} parent=0
    #allocation2 [shape = 'u8[8192]{0}', space=vmem, size = 0x2000, scoped, tag = 'input window, operand 0, single buffered']
    #allocation3 [shape = 's32[1]{0}', space=sflag, size = 0x4, scoped, tag = 'scoped memory for tpu_custom_call.1']
    #allocation4 [shape = 's32[1]{0}', space=sflag, size = 0x4, scoped, tag = 'scoped memory for tpu_custom_call.1']
    #allocation5 [shape = 'u8[65536]{0}', space=vmem, size = 0x10000, scoped, tag = 'input window, operand 1, single buffered']
    #allocation6 [shape = 's32[1]{0}', space=sflag, size = 0x4, scoped, tag = 'scoped memory for tpu_custom_call.1']
    #allocation7 [shape = 'u8[65536]{0}', space=vmem, size = 0x10000, scoped, tag = 'input window, operand 3, single buffered']
    #allocation8 [shape = 'u8[65536]{0}', space=vmem, size = 0x10000, scoped, tag = 'input window, operand 5, single buffered']
    #allocation9 [shape = 's32[1]{0}', space=sflag, size = 0x4, scoped, tag = 'scoped memory for tpu_custom_call.1']
    #allocation10 [shape = 'u8[8192]{0}', space=vmem, size = 0x2000, scoped, tag = 'output window, operand 0, single buffered']
    %11 = vsyncpa [#allocation3], 0
    %12 = vsyncpa [#allocation6], 0
    %13 = vsyncpa [#allocation9], 0
    %14 = vsyncpa [#allocation4], 0
    // Predicated region
    $region2: #{tpu_custom_call.1} parent=1 // pred_check
      _
    $region3: #{tpu_custom_call.1} parent=1 // pred_check_branch
      %16 = sbr.rel (0) target = $region5
    $region4: #{tpu_custom_call.1} parent=1 // pred_region
      %s18 = ssub.s32 256, 256
      %19 = vsyncadd [#allocation3], %s18
      %s20 = sshll.u32 [#allocation2], 4
      %s21 = int_to_ptr.vmem [resolvable:$true] %s20
      %26 = dma.hbm_to_vmem [thread:$0]  %s0, 256, %s21, [#allocation3], 128, 128, 8
    $region5: #{tpu_custom_call.1} parent=1 // pred_fallthru
      _
    // Predicated region
    $region6: #{tpu_custom_call.1} parent=1 // pred_check
      _
    $region7: #{tpu_custom_call.1} parent=1 // pred_check_branch
      %28 = sbr.rel (0) target = $region9
    $region8: #{tpu_custom_call.1} parent=1 // pred_region
      %s30 = ssub.s32 2048, 2048
      %31 = vsyncadd [#allocation6], %s30
      %s32 = sshll.u32 [#allocation5], 4
      %s33 = int_to_ptr.vmem [resolvable:$true] %s32
      %38 = dma.hbm_to_vmem [thread:$0]  %s1, 2048, %s33, [#allocation6], 128, 128, 8
    $region9: #{tpu_custom_call.1} parent=1 // pred_fallthru
      _
    // Predicated region
    $region10: #{tpu_custom_call.1} parent=1 // pred_check
      _
    $region11: #{tpu_custom_call.1} parent=1 // pred_check_branch
      %40 = sbr.rel (0) target = $region13
    $region12: #{tpu_custom_call.1} parent=1 // pred_region
      _
    $region13: #{tpu_custom_call.1} parent=1 // pred_fallthru
      _
    // Predicated region
    $region14: #{tpu_custom_call.1} parent=1 // pred_check
      _
    $region15: #{tpu_custom_call.1} parent=1 // pred_check_branch
      %42 = sbr.rel (0) target = $region17
    $region16: #{tpu_custom_call.1} parent=1 // pred_region
      %s44 = ssub.s32 2048, 2048
      %45 = vsyncadd [#allocation6], %s44
      %s46 = sshll.u32 [#allocation7], 4
      %s47 = int_to_ptr.vmem [resolvable:$true] %s46
      %52 = dma.hbm_to_vmem [thread:$0]  %s3, 2048, %s47, [#allocation6], 128, 128, 8
    $region17: #{tpu_custom_call.1} parent=1 // pred_fallthru
      _
    // Predicated region
    $region18: #{tpu_custom_call.1} parent=1 // pred_check
      _
    $region19: #{tpu_custom_call.1} parent=1 // pred_check_branch
      %54 = sbr.rel (0) target = $region21
    $region20: #{tpu_custom_call.1} parent=1 // pred_region
      _
    $region21: #{tpu_custom_call.1} parent=1 // pred_fallthru
      _
    // Predicated region
    $region22: #{tpu_custom_call.1} parent=1 // pred_check
      _
    $region23: #{tpu_custom_call.1} parent=1 // pred_check_branch
      %56 = sbr.rel (0) target = $region25
    $region24: #{tpu_custom_call.1} parent=1 // pred_region
      %s58 = ssub.s32 2048, 2048
      %59 = vsyncadd [#allocation9], %s58
      %s60 = sshll.u32 [#allocation8], 4
      %s61 = int_to_ptr.vmem [resolvable:$true] %s60
      %66 = dma.hbm_to_vmem [thread:$0]  %s5, 2048, %s61, [#allocation9], 128, 128, 8
    $region25: #{tpu_custom_call.1} parent=1 // pred_fallthru
      _
    // Predicated region
    $region26: #{tpu_custom_call.1} parent=1 // pred_check
      _
    $region27: #{tpu_custom_call.1} parent=1 // pred_check_branch
      %68 = sbr.rel (0) target = $region29
    $region28: #{tpu_custom_call.1} parent=1 // pred_region
      %69 = dma.done [#allocation3], 256
    $region29: #{tpu_custom_call.1} parent=1 // pred_fallthru
      _
    // Predicated region
    $region30: #{tpu_custom_call.1} parent=1 // pred_check
      _
    $region31: #{tpu_custom_call.1} parent=1 // pred_check_branch
      %71 = sbr.rel (0) target = $region33
    $region32: #{tpu_custom_call.1} parent=1 // pred_region
      %72 = dma.done [#allocation6], 2048
    $region33: #{tpu_custom_call.1} parent=1 // pred_fallthru
      _
    // Predicated region
    $region34: #{tpu_custom_call.1} parent=1 // pred_check
      _
    $region35: #{tpu_custom_call.1} parent=1 // pred_check_branch
      %74 = sbr.rel (0) target = $region37
    $region36: #{tpu_custom_call.1} parent=1 // pred_region
      %75 = dma.done [#allocation6], 2048
    $region37: #{tpu_custom_call.1} parent=1 // pred_fallthru
      _
    // Predicated region
    $region38: #{tpu_custom_call.1} parent=1 // pred_check
      _
    $region39: #{tpu_custom_call.1} parent=1 // pred_check_branch
      %77 = sbr.rel (0) target = $region41
    $region40: #{tpu_custom_call.1} parent=1 // pred_region
      %78 = dma.done [#allocation9], 2048
    $region41: #{tpu_custom_call.1} parent=1 // pred_fallthru
      _
    %v79 = vld [vmem:[#allocation2] sm:$0xff]
    %v80 = vld [vmem:[#allocation2 + $0x8] sm:$0xff]
    %v81 = vmax.f32 %v79, 0.0
    %v82 = vmax.f32 %v80, 0.0
    %v83 = vld [vmem:[#allocation5] sm:$0xff]
    %v84 = vld [vmem:[#allocation5 + $0x8] sm:$0xff]
    %v85 = vld [vmem:[#allocation5 + $0x10] sm:$0xff]
    %v86 = vld [vmem:[#allocation5 + $0x18] sm:$0xff]
    %v87 = vld [vmem:[#allocation5 + $0x20] sm:$0xff]
    %v88 = vld [vmem:[#allocation5 + $0x28] sm:$0xff]
    %v89 = vld [vmem:[#allocation5 + $0x30] sm:$0xff]
    %v90 = vld [vmem:[#allocation5 + $0x38] sm:$0xff]
    %v91 = vld [vmem:[#allocation5 + $0x40] sm:$0xff]
    %v92 = vld [vmem:[#allocation5 + $0x48] sm:$0xff]
    %v93 = vld [vmem:[#allocation5 + $0x50] sm:$0xff]
    %v94 = vld [vmem:[#allocation5 + $0x58] sm:$0xff]
    %v95 = vld [vmem:[#allocation5 + $0x60] sm:$0xff]
    %v96 = vld [vmem:[#allocation5 + $0x68] sm:$0xff]
    %v97 = vld [vmem:[#allocation5 + $0x70] sm:$0xff]
    %v98 = vld [vmem:[#allocation5 + $0x78] sm:$0xff]
    %v99 = vld [vmem:[%s2] sm:$0x1]
    %v101 = vlaneseq
    %v102 = vshrl.u32 %v101, 7
    %v103 = vsub.s32 0, %v102
    %v104 = vrot.slane %v99, %v103
    %106 = vmatprep.subr.mxu0 0.0
    %107 = vmatpush1.msra.mxu0 %v83
    %108 = vmatprep.subr.mxu0 0.0
    %109 = vmatpush1.msra.mxu0 %v84
    %110 = vmatprep.subr.mxu0 0.0
    %111 = vmatpush1.msra.mxu0 %v85
    %112 = vmatprep.subr.mxu0 0.0
    %113 = vmatpush1.msra.mxu0 %v86
    %114 = vmatprep.subr.mxu0 0.0
    %115 = vmatpush1.msra.mxu0 %v87
    %116 = vmatprep.subr.mxu0 0.0
    %117 = vmatpush1.msra.mxu0 %v88
    %118 = vmatprep.subr.mxu0 0.0
    %119 = vmatpush1.msra.mxu0 %v89
    %120 = vmatprep.subr.mxu0 0.0
    %121 = vmatpush1.msra.mxu0 %v90
    %122 = vmatprep.subr.mxu0 0.0
    %123 = vmatpush1.msra.mxu0 %v91
    %124 = vmatprep.subr.mxu0 0.0
    %125 = vmatpush1.msra.mxu0 %v92
    %126 = vmatprep.subr.mxu0 0.0
    %127 = vmatpush1.msra.mxu0 %v93
    %128 = vmatprep.subr.mxu0 0.0
    %129 = vmatpush1.msra.mxu0 %v94
    %130 = vmatprep.subr.mxu0 0.0
    %131 = vmatpush1.msra.mxu0 %v95
    %132 = vmatprep.subr.mxu0 0.0
    %133 = vmatpush1.msra.mxu0 %v96
    %134 = vmatprep.subr.mxu0 0.0
    %135 = vmatpush1.msra.mxu0 %v97
    %136 = vmatprep.subr.mxu0 0.0
    %137 = vmatpush1.msra.mxu0 %v98
    %138 = vmatprep.subr.mxu0 0.0
    %139 = vmatpush1.msra.mxu0 0.0
    %140 = vmatprep.subr.mxu0 0.0
    %141 = vmatpush1.msra.mxu0 0.0
    %142 = vmatprep.subr.mxu0 0.0
    %143 = vmatpush1.msra.mxu0 0.0
    %144 = vmatprep.subr.mxu0 0.0
    %145 = vmatpush1.msra.mxu0 0.0
    %146 = vmatprep.subr.mxu0 0.0
    %147 = vmatpush1.msra.mxu0 0.0
    %148 = vmatprep.subr.mxu0 0.0
    %149 = vmatpush1.msra.mxu0 0.0
    %150 = vmatprep.subr.mxu0 0.0
    %151 = vmatpush1.msra.mxu0 0.0
    %152 = vmatprep.subr.mxu0 0.0
    %153 = vmatpush1.msra.mxu0 0.0
    %154 = vmatprep.subr.mxu0 0.0
    %155 = vmatpush1.msra.mxu0 0.0
    %156 = vmatprep.subr.mxu0 0.0
    %157 = vmatpush1.msra.mxu0 0.0
    %158 = vmatprep.subr.mxu0 0.0
    %159 = vmatpush1.msra.mxu0 0.0
    %160 = vmatprep.subr.mxu0 0.0
    %161 = vmatpush1.msra.mxu0 0.0
    %162 = vmatprep.subr.mxu0 0.0
    %163 = vmatpush1.msra.mxu0 0.0
    %164 = vmatprep.subr.mxu0 0.0
    %165 = vmatpush1.msra.mxu0 0.0
    %166 = vmatprep.subr.mxu0 0.0
    %167 = vmatpush1.msra.mxu0 0.0
    %168 = vmatprep.subr.mxu0 0.0
    %169 = vmatpush1.msra.mxu0 0.0
    %170 = vmatprep.mubr.f32.mxu0 0.0
    %171 = vmatmul.mubr.f32.gmra.mrb[0].mxu0 %v81
    %v172 = vpop.f32.mrb[0].mxu0
    %v173 = vadd.f32 %v104, %v172
    %v174 = vpop.f32.mrb[0].mxu0
    %175 = vmatprep.mubr.f32.mxu0 0.0
    %176 = vmatmul.mubr.f32.gmra.mrb[0].mxu0 %v82
    %v177 = vpop.f32.mrb[0].mxu0
    %v178 = vadd.f32 %v104, %v177
    %v179 = vpop.f32.mrb[0].mxu0
    %180 = vdwg.mxu0
    %v181 = vmax.f32 %v173, 0.0
    %v182 = vmax.f32 %v178, 0.0
    %v183 = vld [vmem:[#allocation7] sm:$0xff]
    %v184 = vld [vmem:[#allocation7 + $0x8] sm:$0xff]
    %v185 = vld [vmem:[#allocation7 + $0x10] sm:$0xff]
    %v186 = vld [vmem:[#allocation7 + $0x18] sm:$0xff]
    %v187 = vld [vmem:[#allocation7 + $0x20] sm:$0xff]
    %v188 = vld [vmem:[#allocation7 + $0x28] sm:$0xff]
    %v189 = vld [vmem:[#allocation7 + $0x30] sm:$0xff]
    %v190 = vld [vmem:[#allocation7 + $0x38] sm:$0xff]
    %v191 = vld [vmem:[#allocation7 + $0x40] sm:$0xff]
    %v192 = vld [vmem:[#allocation7 + $0x48] sm:$0xff]
    %v193 = vld [vmem:[#allocation7 + $0x50] sm:$0xff]
    %v194 = vld [vmem:[#allocation7 + $0x58] sm:$0xff]
    %v195 = vld [vmem:[#allocation7 + $0x60] sm:$0xff]
    %v196 = vld [vmem:[#allocation7 + $0x68] sm:$0xff]
    %v197 = vld [vmem:[#allocation7 + $0x70] sm:$0xff]
    %v198 = vld [vmem:[#allocation7 + $0x78] sm:$0xff]
    %v199 = vld [vmem:[%s4] sm:$0x1]
    %v201 = vlaneseq
    %v202 = vshrl.u32 %v201, 7
    %v203 = vsub.s32 0, %v202
    %v204 = vrot.slane %v199, %v203
    %206 = vmatprep.subr.mxu0 0.0
    %207 = vmatpush1.msra.mxu0 %v183
    %208 = vmatprep.subr.mxu0 0.0
    %209 = vmatpush1.msra.mxu0 %v184
    %210 = vmatprep.subr.mxu0 0.0
    %211 = vmatpush1.msra.mxu0 %v185
    %212 = vmatprep.subr.mxu0 0.0
    %213 = vmatpush1.msra.mxu0 %v186
    %214 = vmatprep.subr.mxu0 0.0
    %215 = vmatpush1.msra.mxu0 %v187
    %216 = vmatprep.subr.mxu0 0.0
    %217 = vmatpush1.msra.mxu0 %v188
    %218 = vmatprep.subr.mxu0 0.0
    %219 = vmatpush1.msra.mxu0 %v189
    %220 = vmatprep.subr.mxu0 0.0
    %221 = vmatpush1.msra.mxu0 %v190
    %222 = vmatprep.subr.mxu0 0.0
    %223 = vmatpush1.msra.mxu0 %v191
    %224 = vmatprep.subr.mxu0 0.0
    %225 = vmatpush1.msra.mxu0 %v192
    %226 = vmatprep.subr.mxu0 0.0
    %227 = vmatpush1.msra.mxu0 %v193
    %228 = vmatprep.subr.mxu0 0.0
    %229 = vmatpush1.msra.mxu0 %v194
    %230 = vmatprep.subr.mxu0 0.0
    %231 = vmatpush1.msra.mxu0 %v195
    %232 = vmatprep.subr.mxu0 0.0
    %233 = vmatpush1.msra.mxu0 %v196
    %234 = vmatprep.subr.mxu0 0.0
    %235 = vmatpush1.msra.mxu0 %v197
    %236 = vmatprep.subr.mxu0 0.0
    %237 = vmatpush1.msra.mxu0 %v198
    %238 = vmatprep.subr.mxu0 0.0
    %239 = vmatpush1.msra.mxu0 0.0
    %240 = vmatprep.subr.mxu0 0.0
    %241 = vmatpush1.msra.mxu0 0.0
    %242 = vmatprep.subr.mxu0 0.0
    %243 = vmatpush1.msra.mxu0 0.0
    %244 = vmatprep.subr.mxu0 0.0
    %245 = vmatpush1.msra.mxu0 0.0
    %246 = vmatprep.subr.mxu0 0.0
    %247 = vmatpush1.msra.mxu0 0.0
    %248 = vmatprep.subr.mxu0 0.0
    %249 = vmatpush1.msra.mxu0 0.0
    %250 = vmatprep.subr.mxu0 0.0
    %251 = vmatpush1.msra.mxu0 0.0
    %252 = vmatprep.subr.mxu0 0.0
    %253 = vmatpush1.msra.mxu0 0.0
    %254 = vmatprep.subr.mxu0 0.0
    %255 = vmatpush1.msra.mxu0 0.0
    %256 = vmatprep.subr.mxu0 0.0
    %257 = vmatpush1.msra.mxu0 0.0
    %258 = vmatprep.subr.mxu0 0.0
    %259 = vmatpush1.msra.mxu0 0.0
    %260 = vmatprep.subr.mxu0 0.0
    %261 = vmatpush1.msra.mxu0 0.0
    %262 = vmatprep.subr.mxu0 0.0
    %263 = vmatpush1.msra.mxu0 0.0
    %264 = vmatprep.subr.mxu0 0.0
    %265 = vmatpush1.msra.mxu0 0.0
    %266 = vmatprep.subr.mxu0 0.0
    %267 = vmatpush1.msra.mxu0 0.0
    %268 = vmatprep.subr.mxu0 0.0
    %269 = vmatpush1.msra.mxu0 0.0
    %270 = vmatprep.mubr.f32.mxu0 0.0
    %271 = vmatmul.mubr.f32.gmra.mrb[0].mxu0 %v181
    %v272 = vpop.f32.mrb[0].mxu0
    %v273 = vadd.f32 %v204, %v272
    %v274 = vpop.f32.mrb[0].mxu0
    %275 = vmatprep.mubr.f32.mxu0 0.0
    %276 = vmatmul.mubr.f32.gmra.mrb[0].mxu0 %v182
    %v277 = vpop.f32.mrb[0].mxu0
    %v278 = vadd.f32 %v204, %v277
    %v279 = vpop.f32.mrb[0].mxu0
    %280 = vdwg.mxu0
    %v281 = vld [vmem:[#allocation8] sm:$0xff]
    %v282 = vld [vmem:[#allocation8 + $0x8] sm:$0xff]
    %v283 = vld [vmem:[#allocation8 + $0x10] sm:$0xff]
    %v284 = vld [vmem:[#allocation8 + $0x18] sm:$0xff]
    %v285 = vld [vmem:[#allocation8 + $0x20] sm:$0xff]
    %v286 = vld [vmem:[#allocation8 + $0x28] sm:$0xff]
    %v287 = vld [vmem:[#allocation8 + $0x30] sm:$0xff]
    %v288 = vld [vmem:[#allocation8 + $0x38] sm:$0xff]
    %v289 = vld [vmem:[#allocation8 + $0x40] sm:$0xff]
    %v290 = vld [vmem:[#allocation8 + $0x48] sm:$0xff]
    %v291 = vld [vmem:[#allocation8 + $0x50] sm:$0xff]
    %v292 = vld [vmem:[#allocation8 + $0x58] sm:$0xff]
    %v293 = vld [vmem:[#allocation8 + $0x60] sm:$0xff]
    %v294 = vld [vmem:[#allocation8 + $0x68] sm:$0xff]
    %v295 = vld [vmem:[#allocation8 + $0x70] sm:$0xff]
    %v296 = vld [vmem:[#allocation8 + $0x78] sm:$0xff]
    %297 = vmatprep.subr.mxu0 0.0
    %298 = vmatpush1.msra.mxu0 %v281
    %299 = vmatprep.subr.mxu0 0.0
    %300 = vmatpush1.msra.mxu0 %v282
    %301 = vmatprep.subr.mxu0 0.0
    %302 = vmatpush1.msra.mxu0 %v283
    %303 = vmatprep.subr.mxu0 0.0
    %304 = vmatpush1.msra.mxu0 %v284
    %305 = vmatprep.subr.mxu0 0.0
    %306 = vmatpush1.msra.mxu0 %v285
    %307 = vmatprep.subr.mxu0 0.0
    %308 = vmatpush1.msra.mxu0 %v286
    %309 = vmatprep.subr.mxu0 0.0
    %310 = vmatpush1.msra.mxu0 %v287
    %311 = vmatprep.subr.mxu0 0.0
    %312 = vmatpush1.msra.mxu0 %v288
    %313 = vmatprep.subr.mxu0 0.0
    %314 = vmatpush1.msra.mxu0 %v289
    %315 = vmatprep.subr.mxu0 0.0
    %316 = vmatpush1.msra.mxu0 %v290
    %317 = vmatprep.subr.mxu0 0.0
    %318 = vmatpush1.msra.mxu0 %v291
    %319 = vmatprep.subr.mxu0 0.0
    %320 = vmatpush1.msra.mxu0 %v292
    %321 = vmatprep.subr.mxu0 0.0
    %322 = vmatpush1.msra.mxu0 %v293
    %323 = vmatprep.subr.mxu0 0.0
    %324 = vmatpush1.msra.mxu0 %v294
    %325 = vmatprep.subr.mxu0 0.0
    %326 = vmatpush1.msra.mxu0 %v295
    %327 = vmatprep.subr.mxu0 0.0
    %328 = vmatpush1.msra.mxu0 %v296
    %329 = vmatprep.subr.mxu0 0.0
    %330 = vmatpush1.msra.mxu0 0.0
    %331 = vmatprep.subr.mxu0 0.0
    %332 = vmatpush1.msra.mxu0 0.0
    %333 = vmatprep.subr.mxu0 0.0
    %334 = vmatpush1.msra.mxu0 0.0
    %335 = vmatprep.subr.mxu0 0.0
    %336 = vmatpush1.msra.mxu0 0.0
    %337 = vmatprep.subr.mxu0 0.0
    %338 = vmatpush1.msra.mxu0 0.0
    %339 = vmatprep.subr.mxu0 0.0
    %340 = vmatpush1.msra.mxu0 0.0
    %341 = vmatprep.subr.mxu0 0.0
    %342 = vmatpush1.msra.mxu0 0.0
    %343 = vmatprep.subr.mxu0 0.0
    %344 = vmatpush1.msra.mxu0 0.0
    %345 = vmatprep.subr.mxu0 0.0
    %346 = vmatpush1.msra.mxu0 0.0
    %347 = vmatprep.subr.mxu0 0.0
    %348 = vmatpush1.msra.mxu0 0.0
    %349 = vmatprep.subr.mxu0 0.0
    %350 = vmatpush1.msra.mxu0 0.0
    %351 = vmatprep.subr.mxu0 0.0
    %352 = vmatpush1.msra.mxu0 0.0
    %353 = vmatprep.subr.mxu0 0.0
    %354 = vmatpush1.msra.mxu0 0.0
    %355 = vmatprep.subr.mxu0 0.0
    %356 = vmatpush1.msra.mxu0 0.0
    %357 = vmatprep.subr.mxu0 0.0
    %358 = vmatpush1.msra.mxu0 0.0
    %359 = vmatprep.subr.mxu0 0.0
    %360 = vmatpush1.msra.mxu0 0.0
    %361 = vmatprep.mubr.f32.mxu0 0.0
    %362 = vmatmul.mubr.f32.gmra.mrb[0].mxu0 %v79
    %v363 = vpop.f32.mrb[0].mxu0
    %v364 = vadd.f32 %v273, %v363
    %v365 = vpop.f32.mrb[0].mxu0
    %366 = vmatprep.mubr.f32.mxu0 0.0
    %367 = vmatmul.mubr.f32.gmra.mrb[0].mxu0 %v80
    %v368 = vpop.f32.mrb[0].mxu0
    %v369 = vadd.f32 %v278, %v368
    %v370 = vpop.f32.mrb[0].mxu0
    %371 = vdwg.mxu0
    %372 = vst [vmem:[#allocation10] sm:$0xff] %v364
    %373 = vst [vmem:[#allocation10 + $0x8] sm:$0xff] %v369
    // Predicated region
    $region42: #{tpu_custom_call.1} parent=1 // pred_check
      _
    $region43: #{tpu_custom_call.1} parent=1 // pred_check_branch
      %375 = sbr.rel (0) target = $region45
    $region44: #{tpu_custom_call.1} parent=1 // pred_region
      %s377 = ssub.s32 256, 256
      %378 = vsyncadd [#allocation4], %s377
      %s379 = sshll.u32 [#allocation10], 4
      %s380 = int_to_ptr.vmem [resolvable:$true] %s379
      %385 = dma.vmem_to_hbm [thread:$0]  %s380, 256, %s6, [#allocation4], 128, 128, 8
    $region45: #{tpu_custom_call.1} parent=1 // pred_fallthru
      _
    // Predicated region
    $region46: #{tpu_custom_call.1} parent=1 // pred_check
      _
    $region47: #{tpu_custom_call.1} parent=1 // pred_check_branch
      %387 = sbr.rel (0) target = $region49
    $region48: #{tpu_custom_call.1} parent=1 // pred_region
      %388 = dma.done [#allocation4], 256
    $region49: #{tpu_custom_call.1} parent=1 // pred_fallthru
      _
    %389 = vsyncpa [#allocation3], 1
    %390 = vsyncpa [#allocation6], 1
    %391 = vsyncpa [#allocation9], 1
    %392 = vsyncpa [#allocation4], 1

</llo_original>
